<compile_context>
chip_gen: v6e
topology: v6e:2x2x1
jax: 0.10.0
libtpu: 0.0.40
codegen_flags: <defaults>
</compile_context>

<pallas_src>
import jax
import jax.numpy as jnp
from jax.experimental import pallas as pl
from jax.experimental.pallas import tpu as pltpu

# ----------------------------- configuration --------------------------------
CLIP_DIM = 32                                   # stand-in CLIP embedding dim
LATENT_DIM = 32                                 # stand-in e4e latent dim
STYLE_LAYERS = ("conv0", "conv1", "torgb0")     # stand-in StyleGAN style space
MANIPULATE_LAYERS = ("conv0", "conv1")
STYLE_DIMS = {"conv0": 32, "conv1": 32, "torgb0": 16}
IMG_C = 4                                       # image channels
SYN_RES = 32                                    # synthesis stand-in resolution


# ------------------------------ Pallas kernel --------------------------------
def _fused_forward_kernel(scal_ref, x_ref, we4e_ref, wmap_ref, dt_ref,
                          fs3t_ref, std_ref, wsynp_ref, o_ref):
    """Fully fused forward:
        x*2-1 -> e4e matmul -> mapping matmul
        -> delta_s (matvec + threshold + absmax normalize, in-kernel)
        -> styles + alpha*delta_s*std -> (synthesis . pool) matmul -> /2+0.5
    """
    alpha = scal_ref[0]
    beta = scal_ref[1]

    # --- image preprocessing (f32) + e4e + mapping (bf16 MXU, f32 acc) ------
    x32 = x_ref[...].astype(jnp.float32) * 2.0 - 1.0                 # img*2-1
    latent = jnp.dot(x32.astype(jnp.bfloat16), we4e_ref[...],
                     preferred_element_type=jnp.float32)             # (B, L)
    styles = jnp.dot(latent.astype(jnp.bfloat16), wmap_ref[...],
                     preferred_element_type=jnp.float32)             # (B, T)

    # --- delta_s: fs3 @ delta_t, threshold, absmax-normalize (all f32) ------
    # fs3t_ref is zero-padded over the non-manipulated (torgb0) columns, so
    # those channels are exactly 0 and never pass the |ds| >= beta test.
    ds = jnp.dot(dt_ref[...], fs3t_ref[...],
                 preferred_element_type=jnp.float32)                 # (1, T)
    keep = jnp.abs(ds) >= beta
    ds = jnp.where(keep, ds, 0.0)
    absmax = jnp.max(jnp.abs(ds), keepdims=True)                     # (1, 1)
    # eps floor: all-below-threshold gives 0s instead of torch's NaNs.
    inv = pl.reciprocal(jnp.maximum(absmax, 1e-12), approx=True)     # EUP slot
    ds = ds * inv

    # --- style manipulation FMA ---------------------------------------------
    styles = styles + alpha * ds * std_ref[...]

    # --- synthesis + area pool (folded into one weight) + /2 + 0.5 ----------
    img = jnp.dot(styles.astype(jnp.bfloat16), wsynp_ref[...],
                  preferred_element_type=jnp.float32)                # (B, C*ohw)
    o_ref[...] = img * 0.5 + 0.5


def pallas_fused_forward(scalars, x_bf16, w_e4e, w_map_cat, dt_row, fs3t_pad,
                         std_row, w_syn_pooled):
    B, in_dim = x_bf16.shape
    latent_dim = w_e4e.shape[1]
    total_dim = w_map_cat.shape[1]
    clip_dim = dt_row.shape[1]
    out_dim = w_syn_pooled.shape[1]

    # TODO(synk): for v7x / non-toy sizes, add a batch/output-tile grid axis
    # with dimension_semantics=("parallel",) so both TensorCores are used and
    # real StyleGAN2 weights fit the 64 MiB VMEM via BlockSpec pipelining.
    return pl.pallas_call(
        _fused_forward_kernel,
        out_shape=jax.ShapeDtypeStruct((B, out_dim), jnp.float32),
        grid=(1,),
        in_specs=[
            pl.BlockSpec(memory_space=pltpu.MemorySpace.SMEM),           # alpha, beta
            pl.BlockSpec((B, in_dim), lambda i: (0, 0)),                 # image
            pl.BlockSpec((in_dim, latent_dim), lambda i: (0, 0)),        # e4e
            pl.BlockSpec((latent_dim, total_dim), lambda i: (0, 0)),     # mapping
            pl.BlockSpec((1, clip_dim), lambda i: (0, 0)),               # delta_t
            pl.BlockSpec((clip_dim, total_dim), lambda i: (0, 0)),       # fs3.T (padded)
            pl.BlockSpec((1, total_dim), lambda i: (0, 0)),              # S_std row
            pl.BlockSpec((total_dim, out_dim), lambda i: (0, 0)),        # synth.pool
        ],
        out_specs=pl.BlockSpec((B, out_dim), lambda i: (0, 0)),
    )(scalars, x_bf16, w_e4e, w_map_cat, dt_row, fs3t_pad, std_row,
      w_syn_pooled)


# --------------------------- host-side constants ------------------------------
def _pool_matrix_flat(h_in, w_in, h_out, w_out):
    """(h_in*w_in, h_out*w_out) matrix implementing F.interpolate(mode='area')
    with integer ratio as a flat matmul (per image channel). Columns sum to 1."""
    assert h_in % h_out == 0 and w_in % w_out == 0
    rh, rw = h_in // h_out, w_in // w_out
    oh = jnp.arange(h_in) // rh
    ow = jnp.arange(w_in) // rw
    out_idx = (oh[:, None] * w_out + ow[None, :]).reshape(-1)   # (h_in*w_in,)
    cols = jnp.arange(h_out * w_out)
    return (out_idx[:, None] == cols[None, :]).astype(jnp.float32) / float(rh * rw)


def _text_embed(text, dim):
    # TODO(synk): real CLIP ViT-B/32 text encoder with imagenet prompt templates.
    seed = sum(ord(c) * (i + 1) for i, c in enumerate(text)) % (2 ** 31 - 1)
    v = jax.random.normal(jax.random.PRNGKey(seed), (dim,), jnp.float32)
    return v / jnp.linalg.norm(v)


# ------------------------------ model wrapper --------------------------------
class Model:
    def __init__(self, in_res=16, beta_threshold=0.1, alpha=3):
        self.beta_threshold = float(beta_threshold)
        self.alpha = float(alpha)
        self.neutral_text = "A face"
        self.in_res = in_res

        key = jax.random.PRNGKey(0)
        k_e4e, k_map, k_std, k_syn, k_fs3 = jax.random.split(key, 5)

        in_dim = IMG_C * in_res * in_res
        total_dim = sum(STYLE_DIMS[l] for l in STYLE_LAYERS)
        n_manip = sum(STYLE_DIMS[l] for l in MANIPULATE_LAYERS)

        # TODO(synk): e4e/pSp encoder replaced by a deterministic linear projection.
        w_e4e = jax.random.normal(k_e4e, (in_dim, LATENT_DIM),
                                  jnp.float32) / jnp.sqrt(in_dim)
        self.w_e4e = w_e4e.astype(jnp.bfloat16)

        # TODO(synk): StyleGAN mapping_stylespace replaced by per-layer linears,
        # pre-concatenated into one (LATENT, total_dim) weight.
        map_keys = jax.random.split(k_map, len(STYLE_LAYERS))
        w_map = {
            layer: jax.random.normal(mk, (LATENT_DIM, STYLE_DIMS[layer]),
                                     jnp.float32) / jnp.sqrt(LATENT_DIM)
            for layer, mk in zip(STYLE_LAYERS, map_keys)
        }
        self.w_map_cat = jnp.concatenate(
            [w_map[l] for l in STYLE_LAYERS], axis=1).astype(jnp.bfloat16)

        std_keys = jax.random.split(k_std, len(STYLE_LAYERS))
        s_std = {
            layer: jnp.abs(jax.random.normal(sk, (STYLE_DIMS[layer],),
                                             jnp.float32)) + 0.1
            for layer, sk in zip(STYLE_LAYERS, std_keys)
        }
        self.std_row = jnp.concatenate(
            [s_std[l] for l in STYLE_LAYERS]).reshape(1, -1)        # (1, T) f32

        # fs3 for the manipulated channels; kernel consumes fs3.T zero-padded
        # over non-manipulated (torgb0) columns -> (CLIP, total_dim).
        self.fs3 = jax.random.normal(k_fs3, (n_manip, CLIP_DIM), jnp.float32)
        self.fs3t_pad = jnp.concatenate(
            [self.fs3.T, jnp.zeros((CLIP_DIM, total_dim - n_manip),
                                   jnp.float32)], axis=1)           # (K, T) f32

        # TODO(synk): StyleGAN2 synthesis replaced by a linear style->image decoder.
        self._w_syn = jax.random.normal(
            k_syn, (total_dim, IMG_C * SYN_RES * SYN_RES),
            jnp.float32) / jnp.sqrt(total_dim)

        # Per-call constants hoisted here.
        self._scalars = jnp.array([self.alpha, self.beta_threshold],
                                  jnp.float32)                       # SMEM
        self._wsynp_cache = {}                    # keyed on out_res
        self._dt_cache = {}                       # keyed on target_text
        self._neutral_emb = _text_embed(self.neutral_text, CLIP_DIM)
        self._get_w_syn_pooled(in_res)            # build the common case once

    # ---- cached constant builders -------------------------------------------
    def _get_w_syn_pooled(self, out_res):
        """w_syn @ blockdiag(pool)  (area pool folded into synthesis weight)."""
        if out_res not in self._wsynp_cache:
            pool = _pool_matrix_flat(SYN_RES, SYN_RES, out_res, out_res)
            hw = SYN_RES * SYN_RES
            cols = [self._w_syn[:, c * hw:(c + 1) * hw] @ pool
                    for c in range(IMG_C)]
            self._wsynp_cache[out_res] = jnp.concatenate(
                cols, axis=1).astype(jnp.bfloat16)   # (T, C*out_res^2)
        return self._wsynp_cache[out_res]

    def _get_delta_t(self, target_text):
        if target_text not in self._dt_cache:
            e_t = _text_embed(target_text, CLIP_DIM)
            d = e_t - self._neutral_emb
            self._dt_cache[target_text] = (
                d / jnp.linalg.norm(d)).reshape(1, CLIP_DIM)
        return self._dt_cache[target_text]

    # ---- API parity helper (forward computes delta_s in-kernel) -------------
    def get_delta_s(self, delta_t):
        ds = self.fs3 @ jnp.asarray(delta_t).reshape(-1)
        keep = jnp.abs(ds) >= self.beta_threshold
        ds = jnp.where(keep, ds, 0.0)
        num_channel = jnp.sum(keep).astype(jnp.int32)
        ds = ds / jnp.max(jnp.abs(ds))
        dic, ind = {}, 0
        for layer in STYLE_LAYERS:
            dim = STYLE_DIMS[layer]
            if layer in MANIPULATE_LAYERS:
                dic[layer] = ds[ind:ind + dim]
                ind += dim
            else:
                dic[layer] = jnp.zeros((dim,), jnp.float32)
        return dic, num_channel

    # ---- forward -------------------------------------------------------------
    def forward(self, img, target_text):
        # img is NCHW float32 in [0, 1].
        B, C, H, W = img.shape
        assert C == IMG_C and H == self.in_res and W == self.in_res

        dt_row = self._get_delta_t(target_text)              # (1, K) f32, cached
        out_res = W                                          # F.interpolate(..., img.size(-1))
        w_syn_pooled = self._get_w_syn_pooled(out_res)       # (T, C*ohw) bf16, cached

        x = img.reshape(B, -1).astype(jnp.bfloat16)
        out_flat = pallas_fused_forward(
            self._scalars, x, self.w_e4e, self.w_map_cat, dt_row,
            self.fs3t_pad, self.std_row, w_syn_pooled)
        return out_flat.reshape(B, IMG_C, out_res, out_res)


# ----------------------------------- main ------------------------------------
if __name__ == "__main__":
    B, C, H, W = 2, IMG_C, 16, 16
    img = jax.random.uniform(jax.random.PRNGKey(0), (B, C, H, W),
                             dtype=jnp.float32)
    model = Model(in_res=H, beta_threshold=0.1, alpha=3)
    out = model.forward(img, "a smiling face")
    out = jax.block_until_ready(out)
    assert out.shape == (B, C, H, W), out.shape
    assert out.dtype == jnp.float32
    assert bool(jnp.all(jnp.isfinite(out)))
    print("KERNEL_OK")
</pallas_src>

<mosaic_0001>
module attributes {stable_mosaic.version = 11 : i64} {
  func.func @_fused_forward_kernel(%arg0: i32, %arg1: memref<2xf32, #tpu.memory_space<smem>>, %arg2: memref<2x1024xbf16, #tpu.memory_space<vmem>>, %arg3: memref<1024x32xbf16, #tpu.memory_space<vmem>>, %arg4: memref<32x80xbf16, #tpu.memory_space<vmem>>, %arg5: memref<1x32xf32, #tpu.memory_space<vmem>>, %arg6: memref<32x80xf32, #tpu.memory_space<vmem>>, %arg7: memref<1x80xf32, #tpu.memory_space<vmem>>, %arg8: memref<80x1024xbf16, #tpu.memory_space<vmem>>, %arg9: memref<2x1024xf32, #tpu.memory_space<vmem>>) attributes {dimension_semantics = [#tpu.dimension_semantics<arbitrary>], iteration_bounds = array<i64: 1>, scalar_prefetch = 0 : i64, scratch_operands = 0 : i64, tpu.core_type = #tpu.core_type<tc>, window_params = [{transform_indices = @transform_0, window_bounds = array<i64: 2>}, {pipeline_mode = #tpu.pipeline_mode<synchronous>, transform_indices = @transform_1, window_bounds = array<i64: 2, 1024>}, {pipeline_mode = #tpu.pipeline_mode<synchronous>, transform_indices = @transform_2, window_bounds = array<i64: 1024, 32>}, {pipeline_mode = #tpu.pipeline_mode<synchronous>, transform_indices = @transform_3, window_bounds = array<i64: 32, 80>}, {pipeline_mode = #tpu.pipeline_mode<synchronous>, transform_indices = @transform_4, window_bounds = array<i64: 1, 32>}, {pipeline_mode = #tpu.pipeline_mode<synchronous>, transform_indices = @transform_5, window_bounds = array<i64: 32, 80>}, {pipeline_mode = #tpu.pipeline_mode<synchronous>, transform_indices = @transform_6, window_bounds = array<i64: 1, 80>}, {pipeline_mode = #tpu.pipeline_mode<synchronous>, transform_indices = @transform_7, window_bounds = array<i64: 80, 1024>}, {pipeline_mode = #tpu.pipeline_mode<synchronous>, transform_indices = @transform_8, window_bounds = array<i64: 2, 1024>}]} {
    %c0 = arith.constant 0 : index
    %0 = memref.load %arg1[%c0] : memref<2xf32, #tpu.memory_space<smem>>
    %c1 = arith.constant 1 : index
    %1 = memref.load %arg1[%c1] : memref<2xf32, #tpu.memory_space<smem>>
    %c0_0 = arith.constant 0 : index
    %c0_1 = arith.constant 0 : index
    %2 = vector.load %arg2[%c0_0, %c0_1] : memref<2x1024xbf16, #tpu.memory_space<vmem>>, vector<2x1024xbf16>
    %3 = arith.extf %2 : vector<2x1024xbf16> to vector<2x1024xf32>
    %cst = arith.constant 2.000000e+00 : f32
    %4 = vector.broadcast %cst : f32 to vector<2x1024xf32>
    %5 = arith.mulf %3, %4 : vector<2x1024xf32>
    %cst_2 = arith.constant 1.000000e+00 : f32
    %6 = vector.broadcast %cst_2 : f32 to vector<2x1024xf32>
    %7 = arith.subf %5, %6 : vector<2x1024xf32>
    %8 = arith.truncf %7 : vector<2x1024xf32> to vector<2x1024xbf16>
    %c0_3 = arith.constant 0 : index
    %c0_4 = arith.constant 0 : index
    %9 = vector.load %arg3[%c0_3, %c0_4] : memref<1024x32xbf16, #tpu.memory_space<vmem>>, vector<1024x32xbf16>
    %cst_5 = arith.constant dense<0.000000e+00> : vector<2x32xf32>
    %10 = tpu.matmul %8, %9, %cst_5 {dimension_numbers = #tpu.dot_dimension_numbers<[1], [0], [0], [1], [0, 0, 1, 1], [], []>} : vector<2x1024xbf16>, vector<1024x32xbf16>, vector<2x32xf32> -> vector<2x32xf32>
    %11 = arith.truncf %10 : vector<2x32xf32> to vector<2x32xbf16>
    %c0_6 = arith.constant 0 : index
    %c0_7 = arith.constant 0 : index
    %12 = vector.load %arg4[%c0_6, %c0_7] : memref<32x80xbf16, #tpu.memory_space<vmem>>, vector<32x80xbf16>
    %cst_8 = arith.constant dense<0.000000e+00> : vector<2x80xf32>
    %13 = tpu.matmul %11, %12, %cst_8 {dimension_numbers = #tpu.dot_dimension_numbers<[1], [0], [0], [1], [0, 0, 1, 1], [], []>} : vector<2x32xbf16>, vector<32x80xbf16>, vector<2x80xf32> -> vector<2x80xf32>
    %c0_9 = arith.constant 0 : index
    %c0_10 = arith.constant 0 : index
    %14 = vector.load %arg5[%c0_9, %c0_10] : memref<1x32xf32, #tpu.memory_space<vmem>>, vector<1x32xf32>
    %c0_11 = arith.constant 0 : index
    %c0_12 = arith.constant 0 : index
    %15 = vector.load %arg6[%c0_11, %c0_12] : memref<32x80xf32, #tpu.memory_space<vmem>>, vector<32x80xf32>
    %cst_13 = arith.constant dense<0.000000e+00> : vector<1x80xf32>
    %16 = tpu.matmul %14, %15, %cst_13 {dimension_numbers = #tpu.dot_dimension_numbers<[1], [0], [0], [1], [0, 0, 1, 1], [], []>} : vector<1x32xf32>, vector<32x80xf32>, vector<1x80xf32> -> vector<1x80xf32>
    %17 = math.absf %16 : vector<1x80xf32>
    %18 = vector.broadcast %1 : f32 to vector<1x80xf32>
    %19 = arith.cmpf oge, %17, %18 : vector<1x80xf32>
    %cst_14 = arith.constant 0.000000e+00 : f32
    %20 = vector.broadcast %cst_14 : f32 to vector<1x80xf32>
    %21 = arith.select %19, %16, %20 : vector<1x80xi1>, vector<1x80xf32>
    %22 = math.absf %21 : vector<1x80xf32>
    %23 = vector.shape_cast %22 : vector<1x80xf32> to vector<1x1x80xf32>
    %cst_15 = arith.constant dense<0xFF800000> : vector<1xf32>
    %24 = vector.multi_reduction <maximumf>, %23, %cst_15 [1, 2] : vector<1x1x80xf32> to vector<1xf32>
    %25 = vector.shape_cast %24 : vector<1xf32> to vector<1x1x1xf32>
    %26 = vector.extract %25[0, 0, 0] : f32 from vector<1x1x1xf32>
    %27 = vector.broadcast %26 : f32 to vector<1x1xf32>
    %cst_16 = arith.constant 9.99999996E-13 : f32
    %28 = vector.broadcast %cst_16 : f32 to vector<1x1xf32>
    %29 = arith.maximumf %27, %28 : vector<1x1xf32>
    %30 = tpu.reciprocal %29 {approx = true} : vector<1x1xf32> -> vector<1x1xf32>
    %31 = vector.broadcast %30 : vector<1x1xf32> to vector<1x80xf32>
    %32 = arith.mulf %21, %31 : vector<1x80xf32>
    %33 = vector.broadcast %0 : f32 to vector<1x80xf32>
    %34 = arith.mulf %33, %32 : vector<1x80xf32>
    %c0_17 = arith.constant 0 : index
    %c0_18 = arith.constant 0 : index
    %35 = vector.load %arg7[%c0_17, %c0_18] : memref<1x80xf32, #tpu.memory_space<vmem>>, vector<1x80xf32>
    %36 = arith.mulf %34, %35 : vector<1x80xf32>
    %37 = vector.broadcast %36 : vector<1x80xf32> to vector<2x80xf32>
    %38 = arith.addf %13, %37 : vector<2x80xf32>
    %39 = arith.truncf %38 : vector<2x80xf32> to vector<2x80xbf16>
    %c0_19 = arith.constant 0 : index
    %c0_20 = arith.constant 0 : index
    %40 = vector.load %arg8[%c0_19, %c0_20] : memref<80x1024xbf16, #tpu.memory_space<vmem>>, vector<80x1024xbf16>
    %cst_21 = arith.constant dense<0.000000e+00> : vector<2x1024xf32>
    %41 = tpu.matmul %39, %40, %cst_21 {dimension_numbers = #tpu.dot_dimension_numbers<[1], [0], [0], [1], [0, 0, 1, 1], [], []>} : vector<2x80xbf16>, vector<80x1024xbf16>, vector<2x1024xf32> -> vector<2x1024xf32>
    %cst_22 = arith.constant 5.000000e-01 : f32
    %42 = vector.broadcast %cst_22 : f32 to vector<2x1024xf32>
    %43 = arith.mulf %41, %42 : vector<2x1024xf32>
    %cst_23 = arith.constant 5.000000e-01 : f32
    %44 = vector.broadcast %cst_23 : f32 to vector<2x1024xf32>
    %45 = arith.addf %43, %44 : vector<2x1024xf32>
    %c0_24 = arith.constant 0 : index
    %c0_25 = arith.constant 0 : index
    %46 = vector.load %arg9[%c0_24, %c0_25] : memref<2x1024xf32, #tpu.memory_space<vmem>>, vector<2x1024xf32>
    tpu.vector_store %arg9[%c0_24, %c0_25], %45 {strides = array<i32>} : memref<2x1024xf32, #tpu.memory_space<vmem>>, vector<2x1024xf32>,
    return
  }
  func.func @transform_0(%arg0: i32) -> i32 {
    %c0_i32 = arith.constant 0 : i32
    %c0_i32_0 = arith.constant 0 : i32
    return %c0_i32 : i32
  }
  func.func @transform_1(%arg0: i32) -> (i32, i32) {
    %c0_i32 = arith.constant 0 : i32
    %c0_i32_0 = arith.constant 0 : i32
    %c0_i32_1 = arith.constant 0 : i32
    return %c0_i32, %c0_i32_0 : i32, i32
  }
  func.func @transform_2(%arg0: i32) -> (i32, i32) {
    %c0_i32 = arith.constant 0 : i32
    %c0_i32_0 = arith.constant 0 : i32
    %c0_i32_1 = arith.constant 0 : i32
    return %c0_i32, %c0_i32_0 : i32, i32
  }
  func.func @transform_3(%arg0: i32) -> (i32, i32) {
    %c0_i32 = arith.constant 0 : i32
    %c0_i32_0 = arith.constant 0 : i32
    %c0_i32_1 = arith.constant 0 : i32
    return %c0_i32, %c0_i32_0 : i32, i32
  }
  func.func @transform_4(%arg0: i32) -> (i32, i32) {
    %c0_i32 = arith.constant 0 : i32
    %c0_i32_0 = arith.constant 0 : i32
    %c0_i32_1 = arith.constant 0 : i32
    return %c0_i32, %c0_i32_0 : i32, i32
  }
  func.func @transform_5(%arg0: i32) -> (i32, i32) {
    %c0_i32 = arith.constant 0 : i32
    %c0_i32_0 = arith.constant 0 : i32
    %c0_i32_1 = arith.constant 0 : i32
    return %c0_i32, %c0_i32_0 : i32, i32
  }
  func.func @transform_6(%arg0: i32) -> (i32, i32) {
    %c0_i32 = arith.constant 0 : i32
    %c0_i32_0 = arith.constant 0 : i32
    %c0_i32_1 = arith.constant 0 : i32
    return %c0_i32, %c0_i32_0 : i32, i32
  }
  func.func @transform_7(%arg0: i32) -> (i32, i32) {
    %c0_i32 = arith.constant 0 : i32
    %c0_i32_0 = arith.constant 0 : i32
    %c0_i32_1 = arith.constant 0 : i32
    return %c0_i32, %c0_i32_0 : i32, i32
  }
  func.func @transform_8(%arg0: i32) -> (i32, i32) {
    %c0_i32 = arith.constant 0 : i32
    %c0_i32_0 = arith.constant 0 : i32
    %c0_i32_1 = arith.constant 0 : i32
    return %c0_i32, %c0_i32_0 : i32, i32
  }
}

</mosaic_0001>

<llo_original>
// kernel: tpu_custom_call.1
$region0: #{tpu_custom_call.1}
  #allocation0 [shape = 'u32[]', space=smem, size = 0x4, offset = 0x4, fixed_abs, tag = 'smem constant byte address 0x4 - core index']
  #allocation1 [shape = 'u32[144,128]{1,0:T(1,128)}', space=vmem, size = 0x12000, scoped, tag = 'internal scratch']
  %s0 = inlined_call_operand.vmem [shape: f32[2], index: 0, kind: input, shape index: {}]
  %s1 = inlined_call_operand.vmem [shape: bf16[2,1024], index: 1, kind: input, shape index: {}]
  %s2 = inlined_call_operand.vmem [shape: bf16[1024,32], index: 2, kind: input, shape index: {}]
  %s3 = inlined_call_operand.vmem [shape: bf16[32,80], index: 3, kind: input, shape index: {}]
  %s4 = inlined_call_operand.vmem [shape: f32[1,32], index: 4, kind: input, shape index: {}]
  %s5 = inlined_call_operand.vmem [shape: f32[32,80], index: 5, kind: input, shape index: {}]
  %s6 = inlined_call_operand.vmem [shape: f32[1,80], index: 6, kind: input, shape index: {}]
  %s7 = inlined_call_operand.vmem [shape: bf16[80,1024], index: 7, kind: input, shape index: {}]
  %s8 = inlined_call_operand.hbm [shape: f32[2,1024], index: 8, kind: output, shape index: {}]
  %s9 = sld [smem:[#allocation0]]
  $region46: #{tpu_custom_call.1} parent=0
    _
  %s11 = ssub.s32 1, %s9
  %s12 = scalar_select 0, %s11, %s9
  $region1: #{tpu_custom_call.1} parent=0
    #allocation2 [shape = 'u8[512]{0}', space=smem, size = 0x200, scoped, tag = 'input window, operand 0, single buffered']
    #allocation3 [shape = 's32[1]{0}', space=sflag, size = 0x4, scoped, tag = 'scoped memory for tpu_custom_call.1']
    #allocation4 [shape = 's32[1]{0}', space=sflag, size = 0x4, scoped, tag = 'scoped memory for tpu_custom_call.1']
    #allocation5 [shape = 'u8[8192]{0}', space=vmem, size = 0x2000, scoped, tag = 'output window, operand 0, single buffered']
    %13 = vsyncpa [#allocation4], 0
    %14 = vsyncpa [#allocation3], 0
    // Predicated region
    $region2: #{tpu_custom_call.1} parent=1 // pred_check
      _
    $region3: #{tpu_custom_call.1} parent=1 // pred_check_branch
      %16 = sbr.rel (0) target = $region5
    $region4: #{tpu_custom_call.1} parent=1 // pred_region
      %s18 = ssub.s32 16, 16
      %19 = vsyncadd [#allocation4], %s18
      %s21 = sshll.u32 %s0, 4
      %s22 = int_to_ptr.vmem [resolvable:$true] %s21
      %24 = dma.vmem_to_smem %s22, 16, [#allocation2], [#allocation4]
    $region5: #{tpu_custom_call.1} parent=1 // pred_fallthru
      _
    // Predicated region
    $region6: #{tpu_custom_call.1} parent=1 // pred_check
      _
    $region7: #{tpu_custom_call.1} parent=1 // pred_check_branch
      %26 = sbr.rel (0) target = $region9
    $region8: #{tpu_custom_call.1} parent=1 // pred_region
      _
    $region9: #{tpu_custom_call.1} parent=1 // pred_fallthru
      _
    // Predicated region
    $region10: #{tpu_custom_call.1} parent=1 // pred_check
      _
    $region11: #{tpu_custom_call.1} parent=1 // pred_check_branch
      %28 = sbr.rel (0) target = $region13
    $region12: #{tpu_custom_call.1} parent=1 // pred_region
      _
    $region13: #{tpu_custom_call.1} parent=1 // pred_fallthru
      _
    // Predicated region
    $region14: #{tpu_custom_call.1} parent=1 // pred_check
      _
    $region15: #{tpu_custom_call.1} parent=1 // pred_check_branch
      %30 = sbr.rel (0) target = $region17
    $region16: #{tpu_custom_call.1} parent=1 // pred_region
      _
    $region17: #{tpu_custom_call.1} parent=1 // pred_fallthru
      _
    // Predicated region
    $region18: #{tpu_custom_call.1} parent=1 // pred_check
      _
    $region19: #{tpu_custom_call.1} parent=1 // pred_check_branch
      %32 = sbr.rel (0) target = $region21
    $region20: #{tpu_custom_call.1} parent=1 // pred_region
      _
    $region21: #{tpu_custom_call.1} parent=1 // pred_fallthru
      _
    // Predicated region
    $region22: #{tpu_custom_call.1} parent=1 // pred_check
      _
    $region23: #{tpu_custom_call.1} parent=1 // pred_check_branch
      %34 = sbr.rel (0) target = $region25
    $region24: #{tpu_custom_call.1} parent=1 // pred_region
      _
    $region25: #{tpu_custom_call.1} parent=1 // pred_fallthru
      _
    // Predicated region
    $region26: #{tpu_custom_call.1} parent=1 // pred_check
      _
    $region27: #{tpu_custom_call.1} parent=1 // pred_check_branch
      %36 = sbr.rel (0) target = $region29
    $region28: #{tpu_custom_call.1} parent=1 // pred_region
      _
    $region29: #{tpu_custom_call.1} parent=1 // pred_fallthru
      _
    // Predicated region
    $region30: #{tpu_custom_call.1} parent=1 // pred_check
      _
    $region31: #{tpu_custom_call.1} parent=1 // pred_check_branch
      %38 = sbr.rel (0) target = $region33
    $region32: #{tpu_custom_call.1} parent=1 // pred_region
      _
    $region33: #{tpu_custom_call.1} parent=1 // pred_fallthru
      _
    // Predicated region
    $region34: #{tpu_custom_call.1} parent=1 // pred_check
      _
    $region35: #{tpu_custom_call.1} parent=1 // pred_check_branch
      %40 = sbr.rel (0) target = $region37
    $region36: #{tpu_custom_call.1} parent=1 // pred_region
      %41 = dma.done [#allocation4], 16
    $region37: #{tpu_custom_call.1} parent=1 // pred_fallthru
      _
    %42 = sfence
    %s44 = sld [smem:[#allocation2]]
    %s45 = sld [smem:[#allocation2 + $0x1]]
    %v46 = vld [vmem:[%s1] sm:$0xff]
    %v47 = vunpack.c.l.bf16 %v46
    %v48 = vunpack.c.h.bf16 %v46
    %v49 = vmul.f32 %v47, 2.0
    %v50 = vmul.f32 %v48, 2.0
    %v51 = vsub.f32 %v49, 1.0
    %v52 = vsub.f32 %v50, 1.0
    %v55 = vcombine.high %v51, %v51
    %v57 = vunpack.c.l.s4 1983009808
    %v58 = vunpack.c.0.s8 %v57
    %v59 = vlaneseq
    %v60 = vshrl.u32 %v59, 7
    %v61 = vsub.s32 %v58, %v60
    %v62 = vrot.slane %v51, %v61
    %v64 = vunpack.c.l.s4 1983009808
    %v65 = vunpack.c.0.s8 %v64
    %v66 = vlaneseq
    %v67 = vshrl.u32 %v66, 7
    %v68 = vsub.s32 %v65, %v67
    %v69 = vrot.slane %v55, %v68
    %v70 = vcombine.high %v62, %v62
    %v71 = vcombine.high %v69, %v69
    %v72 = vcombine.high %v52, %v52
    %v74 = vunpack.c.l.s4 1983009808
    %v75 = vunpack.c.0.s8 %v74
    %v76 = vlaneseq
    %v77 = vshrl.u32 %v76, 7
    %v78 = vsub.s32 %v75, %v77
    %v79 = vrot.slane %v52, %v78
    %v81 = vunpack.c.l.s4 1983009808
    %v82 = vunpack.c.0.s8 %v81
    %v83 = vlaneseq
    %v84 = vshrl.u32 %v83, 7
    %v85 = vsub.s32 %v82, %v84
    %v86 = vrot.slane %v72, %v85
    %v87 = vcombine.high %v79, %v79
    %v88 = vcombine.high %v86, %v86
    %v97 = vpack.c.bf16 %v62, %v62
    %v98 = vpack.c.bf16 %v70, %v70
    %v99 = vpack.c.bf16 %v69, %v69
    %v100 = vpack.c.bf16 %v71, %v71
    %v101 = vpack.c.bf16 %v79, %v79
    %v102 = vpack.c.bf16 %v87, %v87
    %v103 = vpack.c.bf16 %v86, %v86
    %v104 = vpack.c.bf16 %v88, %v88
    %v105 = vld [vmem:[%s2] sm:$0xf]
    %v106 = vld [vmem:[%s2 + $0x4] sm:$0xf]
    %v107 = vld [vmem:[%s2 + $0x8] sm:$0xf]
    %v108 = vld [vmem:[%s2 + $0xc] sm:$0xf]
    %v109 = vld [vmem:[%s2 + $0x10] sm:$0xf]
    %v110 = vld [vmem:[%s2 + $0x14] sm:$0xf]
    %v111 = vld [vmem:[%s2 + $0x18] sm:$0xf]
    %v112 = vld [vmem:[%s2 + $0x1c] sm:$0xf]
    %v113 = vld [vmem:[%s2 + $0x20] sm:$0xf]
    %v114 = vld [vmem:[%s2 + $0x24] sm:$0xf]
    %v115 = vld [vmem:[%s2 + $0x28] sm:$0xf]
    %v116 = vld [vmem:[%s2 + $0x2c] sm:$0xf]
    %v117 = vld [vmem:[%s2 + $0x30] sm:$0xf]
    %v118 = vld [vmem:[%s2 + $0x34] sm:$0xf]
    %v119 = vld [vmem:[%s2 + $0x38] sm:$0xf]
    %v120 = vld [vmem:[%s2 + $0x3c] sm:$0xf]
    %v121 = vld [vmem:[%s2 + $0x40] sm:$0xf]
    %v122 = vld [vmem:[%s2 + $0x44] sm:$0xf]
    %v123 = vld [vmem:[%s2 + $0x48] sm:$0xf]
    %v124 = vld [vmem:[%s2 + $0x4c] sm:$0xf]
    %v125 = vld [vmem:[%s2 + $0x50] sm:$0xf]
    %v126 = vld [vmem:[%s2 + $0x54] sm:$0xf]
    %v127 = vld [vmem:[%s2 + $0x58] sm:$0xf]
    %v128 = vld [vmem:[%s2 + $0x5c] sm:$0xf]
    %v129 = vld [vmem:[%s2 + $0x60] sm:$0xf]
    %v130 = vld [vmem:[%s2 + $0x64] sm:$0xf]
    %v131 = vld [vmem:[%s2 + $0x68] sm:$0xf]
    %v132 = vld [vmem:[%s2 + $0x6c] sm:$0xf]
    %v133 = vld [vmem:[%s2 + $0x70] sm:$0xf]
    %v134 = vld [vmem:[%s2 + $0x74] sm:$0xf]
    %v135 = vld [vmem:[%s2 + $0x78] sm:$0xf]
    %v136 = vld [vmem:[%s2 + $0x7c] sm:$0xf]
    %v137 = vld [vmem:[%s2 + $0x80] sm:$0xf]
    %v138 = vld [vmem:[%s2 + $0x84] sm:$0xf]
    %v139 = vld [vmem:[%s2 + $0x88] sm:$0xf]
    %v140 = vld [vmem:[%s2 + $0x8c] sm:$0xf]
    %v141 = vld [vmem:[%s2 + $0x90] sm:$0xf]
    %v142 = vld [vmem:[%s2 + $0x94] sm:$0xf]
    %v143 = vld [vmem:[%s2 + $0x98] sm:$0xf]
    %v144 = vld [vmem:[%s2 + $0x9c] sm:$0xf]
    %v145 = vld [vmem:[%s2 + $0xa0] sm:$0xf]
    %v146 = vld [vmem:[%s2 + $0xa4] sm:$0xf]
    %v147 = vld [vmem:[%s2 + $0xa8] sm:$0xf]
    %v148 = vld [vmem:[%s2 + $0xac] sm:$0xf]
    %v149 = vld [vmem:[%s2 + $0xb0] sm:$0xf]
    %v150 = vld [vmem:[%s2 + $0xb4] sm:$0xf]
    %v151 = vld [vmem:[%s2 + $0xb8] sm:$0xf]
    %v152 = vld [vmem:[%s2 + $0xbc] sm:$0xf]
    %v153 = vld [vmem:[%s2 + $0xc0] sm:$0xf]
    %v154 = vld [vmem:[%s2 + $0xc4] sm:$0xf]
    %v155 = vld [vmem:[%s2 + $0xc8] sm:$0xf]
    %v156 = vld [vmem:[%s2 + $0xcc] sm:$0xf]
    %v157 = vld [vmem:[%s2 + $0xd0] sm:$0xf]
    %v158 = vld [vmem:[%s2 + $0xd4] sm:$0xf]
    %v159 = vld [vmem:[%s2 + $0xd8] sm:$0xf]
    %v160 = vld [vmem:[%s2 + $0xdc] sm:$0xf]
    %v161 = vld [vmem:[%s2 + $0xe0] sm:$0xf]
    %v162 = vld [vmem:[%s2 + $0xe4] sm:$0xf]
    %v163 = vld [vmem:[%s2 + $0xe8] sm:$0xf]
    %v164 = vld [vmem:[%s2 + $0xec] sm:$0xf]
    %v165 = vld [vmem:[%s2 + $0xf0] sm:$0xf]
    %v166 = vld [vmem:[%s2 + $0xf4] sm:$0xf]
    %v167 = vld [vmem:[%s2 + $0xf8] sm:$0xf]
    %v168 = vld [vmem:[%s2 + $0xfc] sm:$0xf]
    %v169 = vld [vmem:[%s2 + $0x100] sm:$0xf]
    %v170 = vld [vmem:[%s2 + $0x104] sm:$0xf]
    %v171 = vld [vmem:[%s2 + $0x108] sm:$0xf]
    %v172 = vld [vmem:[%s2 + $0x10c] sm:$0xf]
    %v173 = vld [vmem:[%s2 + $0x110] sm:$0xf]
    %v174 = vld [vmem:[%s2 + $0x114] sm:$0xf]
    %v175 = vld [vmem:[%s2 + $0x118] sm:$0xf]
    %v176 = vld [vmem:[%s2 + $0x11c] sm:$0xf]
    %v177 = vld [vmem:[%s2 + $0x120] sm:$0xf]
    %v178 = vld [vmem:[%s2 + $0x124] sm:$0xf]
    %v179 = vld [vmem:[%s2 + $0x128] sm:$0xf]
    %v180 = vld [vmem:[%s2 + $0x12c] sm:$0xf]
    %v181 = vld [vmem:[%s2 + $0x130] sm:$0xf]
    %v182 = vld [vmem:[%s2 + $0x134] sm:$0xf]
    %v183 = vld [vmem:[%s2 + $0x138] sm:$0xf]
    %v184 = vld [vmem:[%s2 + $0x13c] sm:$0xf]
    %v185 = vld [vmem:[%s2 + $0x140] sm:$0xf]
    %v186 = vld [vmem:[%s2 + $0x144] sm:$0xf]
    %v187 = vld [vmem:[%s2 + $0x148] sm:$0xf]
    %v188 = vld [vmem:[%s2 + $0x14c] sm:$0xf]
    %v189 = vld [vmem:[%s2 + $0x150] sm:$0xf]
    %v190 = vld [vmem:[%s2 + $0x154] sm:$0xf]
    %v191 = vld [vmem:[%s2 + $0x158] sm:$0xf]
    %v192 = vld [vmem:[%s2 + $0x15c] sm:$0xf]
    %v193 = vld [vmem:[%s2 + $0x160] sm:$0xf]
    %v194 = vld [vmem:[%s2 + $0x164] sm:$0xf]
    %v195 = vld [vmem:[%s2 + $0x168] sm:$0xf]
    %v196 = vld [vmem:[%s2 + $0x16c] sm:$0xf]
    %v197 = vld [vmem:[%s2 + $0x170] sm:$0xf]
    %v198 = vld [vmem:[%s2 + $0x174] sm:$0xf]
    %v199 = vld [vmem:[%s2 + $0x178] sm:$0xf]
    %v200 = vld [vmem:[%s2 + $0x17c] sm:$0xf]
    %v201 = vld [vmem:[%s2 + $0x180] sm:$0xf]
    %v202 = vld [vmem:[%s2 + $0x184] sm:$0xf]
    %v203 = vld [vmem:[%s2 + $0x188] sm:$0xf]
    %v204 = vld [vmem:[%s2 + $0x18c] sm:$0xf]
    %v205 = vld [vmem:[%s2 + $0x190] sm:$0xf]
    %v206 = vld [vmem:[%s2 + $0x194] sm:$0xf]
    %v207 = vld [vmem:[%s2 + $0x198] sm:$0xf]
    %v208 = vld [vmem:[%s2 + $0x19c] sm:$0xf]
    %v209 = vld [vmem:[%s2 + $0x1a0] sm:$0xf]
    %v210 = vld [vmem:[%s2 + $0x1a4] sm:$0xf]
    %v211 = vld [vmem:[%s2 + $0x1a8] sm:$0xf]
    %v212 = vld [vmem:[%s2 + $0x1ac] sm:$0xf]
    %v213 = vld [vmem:[%s2 + $0x1b0] sm:$0xf]
    %v214 = vld [vmem:[%s2 + $0x1b4] sm:$0xf]
    %v215 = vld [vmem:[%s2 + $0x1b8] sm:$0xf]
    %v216 = vld [vmem:[%s2 + $0x1bc] sm:$0xf]
    %v217 = vld [vmem:[%s2 + $0x1c0] sm:$0xf]
    %v218 = vld [vmem:[%s2 + $0x1c4] sm:$0xf]
    %v219 = vld [vmem:[%s2 + $0x1c8] sm:$0xf]
    %v220 = vld [vmem:[%s2 + $0x1cc] sm:$0xf]
    %v221 = vld [vmem:[%s2 + $0x1d0] sm:$0xf]
    %v222 = vld [vmem:[%s2 + $0x1d4] sm:$0xf]
    %v223 = vld [vmem:[%s2 + $0x1d8] sm:$0xf]
    %v224 = vld [vmem:[%s2 + $0x1dc] sm:$0xf]
    %v225 = vld [vmem:[%s2 + $0x1e0] sm:$0xf]
    %v226 = vld [vmem:[%s2 + $0x1e4] sm:$0xf]
    %v227 = vld [vmem:[%s2 + $0x1e8] sm:$0xf]
    %v228 = vld [vmem:[%s2 + $0x1ec] sm:$0xf]
    %v229 = vld [vmem:[%s2 + $0x1f0] sm:$0xf]
    %v230 = vld [vmem:[%s2 + $0x1f4] sm:$0xf]
    %v231 = vld [vmem:[%s2 + $0x1f8] sm:$0xf]
    %v232 = vld [vmem:[%s2 + $0x1fc] sm:$0xf]
    %v361 = vunpack.c.l.b16 %v105
    %v362 = vunpack.c.l.b16 %v106
    %v363 = vunpack.c.l.b16 %v107
    %v364 = vunpack.c.l.b16 %v108
    %v365 = vunpack.c.l.b16 %v109
    %v366 = vunpack.c.l.b16 %v110
    %v367 = vunpack.c.l.b16 %v111
    %v368 = vunpack.c.l.b16 %v112
    %v369 = vunpack.c.l.b16 %v113
    %v370 = vunpack.c.l.b16 %v114
    %v371 = vunpack.c.l.b16 %v115
    %v372 = vunpack.c.l.b16 %v116
    %v373 = vunpack.c.l.b16 %v117
    %v374 = vunpack.c.l.b16 %v118
    %v375 = vunpack.c.l.b16 %v119
    %v376 = vunpack.c.l.b16 %v120
    %v377 = vunpack.c.l.b16 %v121
    %v378 = vunpack.c.l.b16 %v122
    %v379 = vunpack.c.l.b16 %v123
    %v380 = vunpack.c.l.b16 %v124
    %v381 = vunpack.c.l.b16 %v125
    %v382 = vunpack.c.l.b16 %v126
    %v383 = vunpack.c.l.b16 %v127
    %v384 = vunpack.c.l.b16 %v128
    %v385 = vunpack.c.l.b16 %v129
    %v386 = vunpack.c.l.b16 %v130
    %v387 = vunpack.c.l.b16 %v131
    %v388 = vunpack.c.l.b16 %v132
    %v389 = vunpack.c.l.b16 %v133
    %v390 = vunpack.c.l.b16 %v134
    %v391 = vunpack.c.l.b16 %v135
    %v392 = vunpack.c.l.b16 %v136
    %v393 = vunpack.c.l.b16 %v137
    %v394 = vunpack.c.l.b16 %v138
    %v395 = vunpack.c.l.b16 %v139
    %v396 = vunpack.c.l.b16 %v140
    %v397 = vunpack.c.l.b16 %v141
    %v398 = vunpack.c.l.b16 %v142
    %v399 = vunpack.c.l.b16 %v143
    %v400 = vunpack.c.l.b16 %v144
    %v401 = vunpack.c.l.b16 %v145
    %v402 = vunpack.c.l.b16 %v146
    %v403 = vunpack.c.l.b16 %v147
    %v404 = vunpack.c.l.b16 %v148
    %v405 = vunpack.c.l.b16 %v149
    %v406 = vunpack.c.l.b16 %v150
    %v407 = vunpack.c.l.b16 %v151
    %v408 = vunpack.c.l.b16 %v152
    %v409 = vunpack.c.l.b16 %v153
    %v410 = vunpack.c.l.b16 %v154
    %v411 = vunpack.c.l.b16 %v155
    %v412 = vunpack.c.l.b16 %v156
    %v413 = vunpack.c.l.b16 %v157
    %v414 = vunpack.c.l.b16 %v158
    %v415 = vunpack.c.l.b16 %v159
    %v416 = vunpack.c.l.b16 %v160
    %v417 = vunpack.c.l.b16 %v161
    %v418 = vunpack.c.l.b16 %v162
    %v419 = vunpack.c.l.b16 %v163
    %v420 = vunpack.c.l.b16 %v164
    %v421 = vunpack.c.l.b16 %v165
    %v422 = vunpack.c.l.b16 %v166
    %v423 = vunpack.c.l.b16 %v167
    %v424 = vunpack.c.l.b16 %v168
    %v425 = vunpack.c.l.b16 %v169
    %v426 = vunpack.c.l.b16 %v170
    %v427 = vunpack.c.l.b16 %v171
    %v428 = vunpack.c.l.b16 %v172
    %v429 = vunpack.c.l.b16 %v173
    %v430 = vunpack.c.l.b16 %v174
    %v431 = vunpack.c.l.b16 %v175
    %v432 = vunpack.c.l.b16 %v176
    %v433 = vunpack.c.l.b16 %v177
    %v434 = vunpack.c.l.b16 %v178
    %v435 = vunpack.c.l.b16 %v179
    %v436 = vunpack.c.l.b16 %v180
    %v437 = vunpack.c.l.b16 %v181
    %v438 = vunpack.c.l.b16 %v182
    %v439 = vunpack.c.l.b16 %v183
    %v440 = vunpack.c.l.b16 %v184
    %v441 = vunpack.c.l.b16 %v185
    %v442 = vunpack.c.l.b16 %v186
    %v443 = vunpack.c.l.b16 %v187
    %v444 = vunpack.c.l.b16 %v188
    %v445 = vunpack.c.l.b16 %v189
    %v446 = vunpack.c.l.b16 %v190
    %v447 = vunpack.c.l.b16 %v191
    %v448 = vunpack.c.l.b16 %v192
    %v449 = vunpack.c.l.b16 %v193
    %v450 = vunpack.c.l.b16 %v194
    %v451 = vunpack.c.l.b16 %v195
    %v452 = vunpack.c.l.b16 %v196
    %v453 = vunpack.c.l.b16 %v197
    %v454 = vunpack.c.l.b16 %v198
    %v455 = vunpack.c.l.b16 %v199
    %v456 = vunpack.c.l.b16 %v200
    %v457 = vunpack.c.l.b16 %v201
    %v458 = vunpack.c.l.b16 %v202
    %v459 = vunpack.c.l.b16 %v203
    %v460 = vunpack.c.l.b16 %v204
    %v461 = vunpack.c.l.b16 %v205
    %v462 = vunpack.c.l.b16 %v206
    %v463 = vunpack.c.l.b16 %v207
    %v464 = vunpack.c.l.b16 %v208
    %v465 = vunpack.c.l.b16 %v209
    %v466 = vunpack.c.l.b16 %v210
    %v467 = vunpack.c.l.b16 %v211
    %v468 = vunpack.c.l.b16 %v212
    %v469 = vunpack.c.l.b16 %v213
    %v470 = vunpack.c.l.b16 %v214
    %v471 = vunpack.c.l.b16 %v215
    %v472 = vunpack.c.l.b16 %v216
    %v473 = vunpack.c.l.b16 %v217
    %v474 = vunpack.c.l.b16 %v218
    %v475 = vunpack.c.l.b16 %v219
    %v476 = vunpack.c.l.b16 %v220
    %v477 = vunpack.c.l.b16 %v221
    %v478 = vunpack.c.l.b16 %v222
    %v479 = vunpack.c.l.b16 %v223
    %v480 = vunpack.c.l.b16 %v224
    %v481 = vunpack.c.l.b16 %v225
    %v482 = vunpack.c.l.b16 %v226
    %v483 = vunpack.c.l.b16 %v227
    %v484 = vunpack.c.l.b16 %v228
    %v485 = vunpack.c.l.b16 %v229
    %v486 = vunpack.c.l.b16 %v230
    %v487 = vunpack.c.l.b16 %v231
    %v488 = vunpack.c.l.b16 %v232
    %v489 = vpack.c.b16 %v362, %v361
    %v490 = vpack.c.b16 %v364, %v363
    %v491 = vpack.c.b16 %v366, %v365
    %v492 = vpack.c.b16 %v368, %v367
    %v493 = vpack.c.b16 %v370, %v369
    %v494 = vpack.c.b16 %v372, %v371
    %v495 = vpack.c.b16 %v374, %v373
    %v496 = vpack.c.b16 %v376, %v375
    %v497 = vpack.c.b16 %v378, %v377
    %v498 = vpack.c.b16 %v380, %v379
    %v499 = vpack.c.b16 %v382, %v381
    %v500 = vpack.c.b16 %v384, %v383
    %v501 = vpack.c.b16 %v386, %v385
    %v502 = vpack.c.b16 %v388, %v387
    %v503 = vpack.c.b16 %v390, %v389
    %v504 = vpack.c.b16 %v392, %v391
    %v505 = vpack.c.b16 %v394, %v393
    %v506 = vpack.c.b16 %v396, %v395
    %v507 = vpack.c.b16 %v398, %v397
    %v508 = vpack.c.b16 %v400, %v399
    %v509 = vpack.c.b16 %v402, %v401
    %v510 = vpack.c.b16 %v404, %v403
    %v511 = vpack.c.b16 %v406, %v405
    %v512 = vpack.c.b16 %v408, %v407
    %v513 = vpack.c.b16 %v410, %v409
    %v514 = vpack.c.b16 %v412, %v411
    %v515 = vpack.c.b16 %v414, %v413
    %v516 = vpack.c.b16 %v416, %v415
    %v517 = vpack.c.b16 %v418, %v417
    %v518 = vpack.c.b16 %v420, %v419
    %v519 = vpack.c.b16 %v422, %v421
    %v520 = vpack.c.b16 %v424, %v423
    %v521 = vpack.c.b16 %v426, %v425
    %v522 = vpack.c.b16 %v428, %v427
    %v523 = vpack.c.b16 %v430, %v429
    %v524 = vpack.c.b16 %v432, %v431
    %v525 = vpack.c.b16 %v434, %v433
    %v526 = vpack.c.b16 %v436, %v435
    %v527 = vpack.c.b16 %v438, %v437
    %v528 = vpack.c.b16 %v440, %v439
    %v529 = vpack.c.b16 %v442, %v441
    %v530 = vpack.c.b16 %v444, %v443
    %v531 = vpack.c.b16 %v446, %v445
    %v532 = vpack.c.b16 %v448, %v447
    %v533 = vpack.c.b16 %v450, %v449
    %v534 = vpack.c.b16 %v452, %v451
    %v535 = vpack.c.b16 %v454, %v453
    %v536 = vpack.c.b16 %v456, %v455
    %v537 = vpack.c.b16 %v458, %v457
    %v538 = vpack.c.b16 %v460, %v459
    %v539 = vpack.c.b16 %v462, %v461
    %v540 = vpack.c.b16 %v464, %v463
    %v541 = vpack.c.b16 %v466, %v465
    %v542 = vpack.c.b16 %v468, %v467
    %v543 = vpack.c.b16 %v470, %v469
    %v544 = vpack.c.b16 %v472, %v471
    %v545 = vpack.c.b16 %v474, %v473
    %v546 = vpack.c.b16 %v476, %v475
    %v547 = vpack.c.b16 %v478, %v477
    %v548 = vpack.c.b16 %v480, %v479
    %v549 = vpack.c.b16 %v482, %v481
    %v550 = vpack.c.b16 %v484, %v483
    %v551 = vpack.c.b16 %v486, %v485
    %v552 = vpack.c.b16 %v488, %v487
    %617 = vmatprep.subr.bf16.mxu0 0
    %618 = vmatpush1.bf16.msra.mxu0 %v496
    %619 = vmatprep.subr.bf16.mxu0 0
    %620 = vmatpush1.bf16.msra.mxu0 %v495
    %621 = vmatprep.subr.bf16.mxu0 0
    %622 = vmatpush1.bf16.msra.mxu0 %v494
    %623 = vmatprep.subr.bf16.mxu0 0
    %624 = vmatpush1.bf16.msra.mxu0 %v493
    %625 = vmatprep.subr.bf16.mxu0 0
    %626 = vmatpush1.bf16.msra.mxu0 %v492
    %627 = vmatprep.subr.bf16.mxu0 0
    %628 = vmatpush1.bf16.msra.mxu0 %v491
    %629 = vmatprep.subr.bf16.mxu0 0
    %630 = vmatpush1.bf16.msra.mxu0 %v490
    %631 = vmatprep.subr.bf16.mxu0 0
    %632 = vmatpush1.bf16.msra.mxu0 %v489
    %633 = vmatprep.subr.bf16.mxu0 0
    %634 = vmatpush2.bf16.msra.mxu0 %v504
    %635 = vmatprep.subr.bf16.mxu0 0
    %636 = vmatpush2.bf16.msra.mxu0 %v503
    %637 = vmatprep.subr.bf16.mxu0 0
    %638 = vmatpush2.bf16.msra.mxu0 %v502
    %639 = vmatprep.subr.bf16.mxu0 0
    %640 = vmatpush2.bf16.msra.mxu0 %v501
    %641 = vmatprep.subr.bf16.mxu0 0
    %642 = vmatpush2.bf16.msra.mxu0 %v500
    %643 = vmatprep.subr.bf16.mxu0 0
    %644 = vmatpush2.bf16.msra.mxu0 %v499
    %645 = vmatprep.subr.bf16.mxu0 0
    %646 = vmatpush2.bf16.msra.mxu0 %v498
    %647 = vmatprep.subr.bf16.mxu0 0
    %648 = vmatpush2.bf16.msra.mxu0 %v497
    %649 = vmatprep.mubr.bf16.mxu0 %v98
    %650 = vmatmul.mubr.bf16.gmra.mxu0 %v97
    %v651 = vpop.f32.mrf.mxu0
    %v652 = vadd.f32 0.0, %v651
    %v653 = vpop.f32.mrf.mxu0
    %v654 = vpop.f32.mrf.mxu0
    %v655 = vpop.f32.mrf.mxu0
    %656 = vdwg.mxu0
    %657 = vmatprep.subr.bf16.mxu0 0
    %658 = vmatpush1.bf16.msra.mxu0 %v512
    %659 = vmatprep.subr.bf16.mxu0 0
    %660 = vmatpush1.bf16.msra.mxu0 %v511
    %661 = vmatprep.subr.bf16.mxu0 0
    %662 = vmatpush1.bf16.msra.mxu0 %v510
    %663 = vmatprep.subr.bf16.mxu0 0
    %664 = vmatpush1.bf16.msra.mxu0 %v509
    %665 = vmatprep.subr.bf16.mxu0 0
    %666 = vmatpush1.bf16.msra.mxu0 %v508
    %667 = vmatprep.subr.bf16.mxu0 0
    %668 = vmatpush1.bf16.msra.mxu0 %v507
    %669 = vmatprep.subr.bf16.mxu0 0
    %670 = vmatpush1.bf16.msra.mxu0 %v506
    %671 = vmatprep.subr.bf16.mxu0 0
    %672 = vmatpush1.bf16.msra.mxu0 %v505
    %673 = vmatprep.subr.bf16.mxu0 0
    %674 = vmatpush2.bf16.msra.mxu0 %v520
    %675 = vmatprep.subr.bf16.mxu0 0
    %676 = vmatpush2.bf16.msra.mxu0 %v519
    %677 = vmatprep.subr.bf16.mxu0 0
    %678 = vmatpush2.bf16.msra.mxu0 %v518
    %679 = vmatprep.subr.bf16.mxu0 0
    %680 = vmatpush2.bf16.msra.mxu0 %v517
    %681 = vmatprep.subr.bf16.mxu0 0
    %682 = vmatpush2.bf16.msra.mxu0 %v516
    %683 = vmatprep.subr.bf16.mxu0 0
    %684 = vmatpush2.bf16.msra.mxu0 %v515
    %685 = vmatprep.subr.bf16.mxu0 0
    %686 = vmatpush2.bf16.msra.mxu0 %v514
    %687 = vmatprep.subr.bf16.mxu0 0
    %688 = vmatpush2.bf16.msra.mxu0 %v513
    %689 = vmatprep.mubr.bf16.mxu0 %v100
    %690 = vmatmul.mubr.bf16.gmra.mxu0 %v99
    %v691 = vpop.f32.mrf.mxu0
    %v692 = vadd.f32 %v652, %v691
    %v693 = vpop.f32.mrf.mxu0
    %v694 = vpop.f32.mrf.mxu0
    %v695 = vpop.f32.mrf.mxu0
    %696 = vdwg.mxu0
    %697 = vmatprep.subr.bf16.mxu0 0
    %698 = vmatpush1.bf16.msra.mxu0 %v528
    %699 = vmatprep.subr.bf16.mxu0 0
    %700 = vmatpush1.bf16.msra.mxu0 %v527
    %701 = vmatprep.subr.bf16.mxu0 0
    %702 = vmatpush1.bf16.msra.mxu0 %v526
    %703 = vmatprep.subr.bf16.mxu0 0
    %704 = vmatpush1.bf16.msra.mxu0 %v525
    %705 = vmatprep.subr.bf16.mxu0 0
    %706 = vmatpush1.bf16.msra.mxu0 %v524
    %707 = vmatprep.subr.bf16.mxu0 0
    %708 = vmatpush1.bf16.msra.mxu0 %v523
    %709 = vmatprep.subr.bf16.mxu0 0
    %710 = vmatpush1.bf16.msra.mxu0 %v522
    %711 = vmatprep.subr.bf16.mxu0 0
    %712 = vmatpush1.bf16.msra.mxu0 %v521
    %713 = vmatprep.subr.bf16.mxu0 0
    %714 = vmatpush2.bf16.msra.mxu0 %v536
    %715 = vmatprep.subr.bf16.mxu0 0
    %716 = vmatpush2.bf16.msra.mxu0 %v535
    %717 = vmatprep.subr.bf16.mxu0 0
    %718 = vmatpush2.bf16.msra.mxu0 %v534
    %719 = vmatprep.subr.bf16.mxu0 0
    %720 = vmatpush2.bf16.msra.mxu0 %v533
    %721 = vmatprep.subr.bf16.mxu0 0
    %722 = vmatpush2.bf16.msra.mxu0 %v532
    %723 = vmatprep.subr.bf16.mxu0 0
    %724 = vmatpush2.bf16.msra.mxu0 %v531
    %725 = vmatprep.subr.bf16.mxu0 0
    %726 = vmatpush2.bf16.msra.mxu0 %v530
    %727 = vmatprep.subr.bf16.mxu0 0
    %728 = vmatpush2.bf16.msra.mxu0 %v529
    %729 = vmatprep.mubr.bf16.mxu0 %v102
    %730 = vmatmul.mubr.bf16.gmra.mxu0 %v101
    %v731 = vpop.f32.mrf.mxu0
    %v732 = vadd.f32 %v692, %v731
    %v733 = vpop.f32.mrf.mxu0
    %v734 = vpop.f32.mrf.mxu0
    %v735 = vpop.f32.mrf.mxu0
    %736 = vdwg.mxu0
    %737 = vmatprep.subr.bf16.mxu0 0
    %738 = vmatpush1.bf16.msra.mxu0 %v544
    %739 = vmatprep.subr.bf16.mxu0 0
    %740 = vmatpush1.bf16.msra.mxu0 %v543
    %741 = vmatprep.subr.bf16.mxu0 0
    %742 = vmatpush1.bf16.msra.mxu0 %v542
    %743 = vmatprep.subr.bf16.mxu0 0
    %744 = vmatpush1.bf16.msra.mxu0 %v541
    %745 = vmatprep.subr.bf16.mxu0 0
    %746 = vmatpush1.bf16.msra.mxu0 %v540
    %747 = vmatprep.subr.bf16.mxu0 0
    %748 = vmatpush1.bf16.msra.mxu0 %v539
    %749 = vmatprep.subr.bf16.mxu0 0
    %750 = vmatpush1.bf16.msra.mxu0 %v538
    %751 = vmatprep.subr.bf16.mxu0 0
    %752 = vmatpush1.bf16.msra.mxu0 %v537
    %753 = vmatprep.subr.bf16.mxu0 0
    %754 = vmatpush2.bf16.msra.mxu0 %v552
    %755 = vmatprep.subr.bf16.mxu0 0
    %756 = vmatpush2.bf16.msra.mxu0 %v551
    %757 = vmatprep.subr.bf16.mxu0 0
    %758 = vmatpush2.bf16.msra.mxu0 %v550
    %759 = vmatprep.subr.bf16.mxu0 0
    %760 = vmatpush2.bf16.msra.mxu0 %v549
    %761 = vmatprep.subr.bf16.mxu0 0
    %762 = vmatpush2.bf16.msra.mxu0 %v548
    %763 = vmatprep.subr.bf16.mxu0 0
    %764 = vmatpush2.bf16.msra.mxu0 %v547
    %765 = vmatprep.subr.bf16.mxu0 0
    %766 = vmatpush2.bf16.msra.mxu0 %v546
    %767 = vmatprep.subr.bf16.mxu0 0
    %768 = vmatpush2.bf16.msra.mxu0 %v545
    %769 = vmatprep.mubr.bf16.mxu0 %v104
    %770 = vmatmul.mubr.bf16.gmra.mxu0 %v103
    %v771 = vpop.f32.mrf.mxu0
    %v772 = vadd.f32 %v732, %v771
    %v773 = vpop.f32.mrf.mxu0
    %v774 = vpop.f32.mrf.mxu0
    %v775 = vpop.f32.mrf.mxu0
    %776 = vdwg.mxu0
    %v777 = vpack.c.bf16 %v772, %v772
    %v778 = vld [vmem:[%s3] sm:$0xf]
    %v779 = vld [vmem:[%s3 + $0x4] sm:$0xf]
    %v780 = vld [vmem:[%s3 + $0x8] sm:$0xf]
    %v781 = vld [vmem:[%s3 + $0xc] sm:$0xf]
    %v782 = vld [vmem:[%s4] sm:$0x1]
    %v783 = vld [vmem:[%s5] sm:$0xff]
    %v784 = vld [vmem:[%s5 + $0x8] sm:$0xff]
    %v785 = vld [vmem:[%s5 + $0x10] sm:$0xff]
    %v786 = vld [vmem:[%s5 + $0x18] sm:$0xff]
    %vm787 = vcmask 261120
    %v789 = vsel %vm787, %v782, 0
    %791 = vmatprep.subr.mxu0 0.0
    %792 = vmatpush1.msra.mxu0 0.0
    %793 = vmatprep.subr.mxu0 0.0
    %794 = vmatpush1.msra.mxu0 0.0
    %795 = vmatprep.subr.mxu0 0.0
    %796 = vmatpush1.msra.mxu0 0.0
    %797 = vmatprep.subr.mxu0 0.0
    %798 = vmatpush1.msra.mxu0 0.0
    %799 = vmatprep.subr.mxu0 0.0
    %800 = vmatpush1.msra.mxu0 0.0
    %801 = vmatprep.subr.mxu0 0.0
    %802 = vmatpush1.msra.mxu0 0.0
    %803 = vmatprep.subr.mxu0 0.0
    %804 = vmatpush1.msra.mxu0 0.0
    %805 = vmatprep.subr.mxu0 0.0
    %806 = vmatpush1.msra.mxu0 0.0
    %807 = vmatprep.subr.mxu0 0.0
    %808 = vmatpush1.msra.mxu0 0.0
    %809 = vmatprep.subr.mxu0 0.0
    %810 = vmatpush1.msra.mxu0 0.0
    %811 = vmatprep.subr.mxu0 0.0
    %812 = vmatpush1.msra.mxu0 0.0
    %813 = vmatprep.subr.mxu0 0.0
    %814 = vmatpush1.msra.mxu0 0.0
    %815 = vmatprep.subr.mxu0 0.0
    %816 = vmatpush1.msra.mxu0 %v786
    %817 = vmatprep.subr.mxu0 0.0
    %818 = vmatpush1.msra.mxu0 %v785
    %819 = vmatprep.subr.mxu0 0.0
    %820 = vmatpush1.msra.mxu0 %v784
    %821 = vmatprep.subr.mxu0 0.0
    %822 = vmatpush1.msra.mxu0 %v783
    %823 = vmatprep.subr.mxu0 0.0
    %824 = vmatpush2.msra.mxu0 0.0
    %825 = vmatprep.subr.mxu0 0.0
    %826 = vmatpush2.msra.mxu0 0.0
    %827 = vmatprep.subr.mxu0 0.0
    %828 = vmatpush2.msra.mxu0 0.0
    %829 = vmatprep.subr.mxu0 0.0
    %830 = vmatpush2.msra.mxu0 0.0
    %831 = vmatprep.subr.mxu0 0.0
    %832 = vmatpush2.msra.mxu0 0.0
    %833 = vmatprep.subr.mxu0 0.0
    %834 = vmatpush2.msra.mxu0 0.0
    %835 = vmatprep.subr.mxu0 0.0
    %836 = vmatpush2.msra.mxu0 0.0
    %837 = vmatprep.subr.mxu0 0.0
    %838 = vmatpush2.msra.mxu0 0.0
    %839 = vmatprep.subr.mxu0 0.0
    %840 = vmatpush2.msra.mxu0 0.0
    %841 = vmatprep.subr.mxu0 0.0
    %842 = vmatpush2.msra.mxu0 0.0
    %843 = vmatprep.subr.mxu0 0.0
    %844 = vmatpush2.msra.mxu0 0.0
    %845 = vmatprep.subr.mxu0 0.0
    %846 = vmatpush2.msra.mxu0 0.0
    %847 = vmatprep.subr.mxu0 0.0
    %848 = vmatpush2.msra.mxu0 0.0
    %849 = vmatprep.subr.mxu0 0.0
    %850 = vmatpush2.msra.mxu0 0.0
    %851 = vmatprep.subr.mxu0 0.0
    %852 = vmatpush2.msra.mxu0 0.0
    %853 = vmatprep.subr.mxu0 0.0
    %854 = vmatpush2.msra.mxu0 0.0
    %855 = vmatprep.mubr.f32.mxu0 0.0
    %856 = vmatmul.mubr.f32.gmra.mxu0 %v789
    %v857 = vpop.f32.mrf.mxu0
    %v858 = vadd.f32 0.0, %v857
    %v859 = vpop.f32.mrf.mxu0
    %860 = vdwg.mxu0
    %v861 = vand.u32 2147483647, %v858
    %v862 = vstv %s45
    %vm863 = vcmp.ge.f32.partialorder %v861, %v862
    %v864 = vsel %vm863, %v858, 0.0
    %v865 = vand.u32 2147483647, %v864
    %vm866 = vcmask 647168
    %v867 = vsel %vm866, %v865, -inf
    %868 = vmax.xlane.f32.xlu0 %v867
    %v869 = vpop.xlane.xlu0 %868
    %v870 = vrot.slane %v869, 4
    %v871 = vmax.f32 %v869, %v870
    %v872 = vrot.slane %v871, 2
    %v873 = vmax.f32 %v871, %v872
    %v874 = vrot.slane %v873, 1
    %v875 = vmax.f32 %v873, %v874
    %s876 = vtos %v875
    %v877 = vstv %s876
    %v878 = vmax.f32 %v877, 1e-12
    %v879 = vrcp.pop %v878
    %v880 = vmul.f32 %v864, %v879
    %v881 = vstv %s44
    %v882 = vmul.f32 %v881, %v880
    %v883 = vld [vmem:[%s6] sm:$0x1]
    %v884 = vmul.f32 %v882, %v883
    %v885 = vlaneseq
    %v886 = vshrl.u32 %v885, 7
    %v887 = vsub.s32 0, %v886
    %v888 = vrot.slane %v884, %v887
    %v893 = vunpack.c.l.b16 %v778
    %v894 = vunpack.c.l.b16 %v779
    %v895 = vunpack.c.l.b16 %v780
    %v896 = vunpack.c.l.b16 %v781
    %v897 = vpack.c.b16 %v894, %v893
    %v898 = vpack.c.b16 %v896, %v895
    %v902 = vsel %vm787, %v777, 0
    %904 = vmatprep.subr.bf16.mxu0 0
    %905 = vmatpush1.bf16.msra.mxu0 0
    %906 = vmatprep.subr.bf16.mxu0 0
    %907 = vmatpush1.bf16.msra.mxu0 0
    %908 = vmatprep.subr.bf16.mxu0 0
    %909 = vmatpush1.bf16.msra.mxu0 0
    %910 = vmatprep.subr.bf16.mxu0 0
    %911 = vmatpush1.bf16.msra.mxu0 0
    %912 = vmatprep.subr.bf16.mxu0 0
    %913 = vmatpush1.bf16.msra.mxu0 0
    %914 = vmatprep.subr.bf16.mxu0 0
    %915 = vmatpush1.bf16.msra.mxu0 0
    %916 = vmatprep.subr.bf16.mxu0 0
    %917 = vmatpush1.bf16.msra.mxu0 %v898
    %918 = vmatprep.subr.bf16.mxu0 0
    %919 = vmatpush1.bf16.msra.mxu0 %v897
    %920 = vmatprep.subr.bf16.mxu0 0
    %921 = vmatpush2.bf16.msra.mxu0 0
    %922 = vmatprep.subr.bf16.mxu0 0
    %923 = vmatpush2.bf16.msra.mxu0 0
    %924 = vmatprep.subr.bf16.mxu0 0
    %925 = vmatpush2.bf16.msra.mxu0 0
    %926 = vmatprep.subr.bf16.mxu0 0
    %927 = vmatpush2.bf16.msra.mxu0 0
    %928 = vmatprep.subr.bf16.mxu0 0
    %929 = vmatpush2.bf16.msra.mxu0 0
    %930 = vmatprep.subr.bf16.mxu0 0
    %931 = vmatpush2.bf16.msra.mxu0 0
    %932 = vmatprep.subr.bf16.mxu0 0
    %933 = vmatpush2.bf16.msra.mxu0 0
    %934 = vmatprep.subr.bf16.mxu0 0
    %935 = vmatpush2.bf16.msra.mxu0 0
    %936 = vmatprep.mubr.bf16.mxu0 0
    %937 = vmatmul.mubr.bf16.gmra.mxu0 %v902
    %v938 = vpop.f32.mrf.mxu0
    %v939 = vadd.f32 %v888, %v938
    %v940 = vpop.f32.mrf.mxu0
    %v941 = vpop.f32.mrf.mxu0
    %v942 = vpop.f32.mrf.mxu0
    %943 = vdwg.mxu0
    %v944 = vpack.c.bf16 %v939, %v939
    %v945 = vld [vmem:[%s7] sm:$0xff]
    %v946 = vld [vmem:[%s7 + $0x8] sm:$0xff]
    %v947 = vld [vmem:[%s7 + $0x10] sm:$0xff]
    %v948 = vld [vmem:[%s7 + $0x18] sm:$0xff]
    %v949 = vld [vmem:[%s7 + $0x20] sm:$0xff]
    %v950 = vld [vmem:[%s7 + $0x28] sm:$0xff]
    %v951 = vld [vmem:[%s7 + $0x30] sm:$0xff]
    %v952 = vld [vmem:[%s7 + $0x38] sm:$0xff]
    %v953 = vld [vmem:[%s7 + $0x40] sm:$0xff]
    %v954 = vld [vmem:[%s7 + $0x48] sm:$0xff]
    %v955 = vld [vmem:[%s7 + $0x50] sm:$0xff]
    %v956 = vld [vmem:[%s7 + $0x58] sm:$0xff]
    %v957 = vld [vmem:[%s7 + $0x60] sm:$0xff]
    %v958 = vld [vmem:[%s7 + $0x68] sm:$0xff]
    %v959 = vld [vmem:[%s7 + $0x70] sm:$0xff]
    %v960 = vld [vmem:[%s7 + $0x78] sm:$0xff]
    %v961 = vld [vmem:[%s7 + $0x80] sm:$0xff]
    %v962 = vld [vmem:[%s7 + $0x88] sm:$0xff]
    %v963 = vld [vmem:[%s7 + $0x90] sm:$0xff]
    %v964 = vld [vmem:[%s7 + $0x98] sm:$0xff]
    %v965 = vld [vmem:[%s7 + $0xa0] sm:$0xff]
    %v966 = vld [vmem:[%s7 + $0xa8] sm:$0xff]
    %v967 = vld [vmem:[%s7 + $0xb0] sm:$0xff]
    %v968 = vld [vmem:[%s7 + $0xb8] sm:$0xff]
    %v969 = vld [vmem:[%s7 + $0xc0] sm:$0xff]
    %v970 = vld [vmem:[%s7 + $0xc8] sm:$0xff]
    %v971 = vld [vmem:[%s7 + $0xd0] sm:$0xff]
    %v972 = vld [vmem:[%s7 + $0xd8] sm:$0xff]
    %v973 = vld [vmem:[%s7 + $0xe0] sm:$0xff]
    %v974 = vld [vmem:[%s7 + $0xe8] sm:$0xff]
    %v975 = vld [vmem:[%s7 + $0xf0] sm:$0xff]
    %v976 = vld [vmem:[%s7 + $0xf8] sm:$0xff]
    %v977 = vld [vmem:[%s7 + $0x100] sm:$0xff]
    %v978 = vld [vmem:[%s7 + $0x108] sm:$0xff]
    %v979 = vld [vmem:[%s7 + $0x110] sm:$0xff]
    %v980 = vld [vmem:[%s7 + $0x118] sm:$0xff]
    %v981 = vld [vmem:[%s7 + $0x120] sm:$0xff]
    %v982 = vld [vmem:[%s7 + $0x128] sm:$0xff]
    %v983 = vld [vmem:[%s7 + $0x130] sm:$0xff]
    %v984 = vld [vmem:[%s7 + $0x138] sm:$0xff]
    %v1025 = vunpack.c.l.b16 %v945
    %v1026 = vunpack.c.h.b16 %v945
    %v1027 = vunpack.c.l.b16 %v946
    %v1028 = vunpack.c.h.b16 %v946
    %v1029 = vunpack.c.l.b16 %v947
    %v1030 = vunpack.c.h.b16 %v947
    %v1031 = vunpack.c.l.b16 %v948
    %v1032 = vunpack.c.h.b16 %v948
    %v1033 = vunpack.c.l.b16 %v949
    %v1034 = vunpack.c.h.b16 %v949
    %v1035 = vunpack.c.l.b16 %v950
    %v1036 = vunpack.c.h.b16 %v950
    %v1037 = vunpack.c.l.b16 %v951
    %v1038 = vunpack.c.h.b16 %v951
    %v1039 = vunpack.c.l.b16 %v952
    %v1040 = vunpack.c.h.b16 %v952
    %v1041 = vunpack.c.l.b16 %v953
    %v1042 = vunpack.c.h.b16 %v953
    %v1043 = vunpack.c.l.b16 %v954
    %v1044 = vunpack.c.h.b16 %v954
    %v1045 = vunpack.c.l.b16 %v955
    %v1046 = vunpack.c.h.b16 %v955
    %v1047 = vunpack.c.l.b16 %v956
    %v1048 = vunpack.c.h.b16 %v956
    %v1049 = vunpack.c.l.b16 %v957
    %v1050 = vunpack.c.h.b16 %v957
    %v1051 = vunpack.c.l.b16 %v958
    %v1052 = vunpack.c.h.b16 %v958
    %v1053 = vunpack.c.l.b16 %v959
    %v1054 = vunpack.c.h.b16 %v959
    %v1055 = vunpack.c.l.b16 %v960
    %v1056 = vunpack.c.h.b16 %v960
    %v1057 = vunpack.c.l.b16 %v961
    %v1058 = vunpack.c.h.b16 %v961
    %v1059 = vunpack.c.l.b16 %v962
    %v1060 = vunpack.c.h.b16 %v962
    %v1061 = vunpack.c.l.b16 %v963
    %v1062 = vunpack.c.h.b16 %v963
    %v1063 = vunpack.c.l.b16 %v964
    %v1064 = vunpack.c.h.b16 %v964
    %v1065 = vunpack.c.l.b16 %v965
    %v1066 = vunpack.c.h.b16 %v965
    %v1067 = vunpack.c.l.b16 %v966
    %v1068 = vunpack.c.h.b16 %v966
    %v1069 = vunpack.c.l.b16 %v967
    %v1070 = vunpack.c.h.b16 %v967
    %v1071 = vunpack.c.l.b16 %v968
    %v1072 = vunpack.c.h.b16 %v968
    %v1073 = vunpack.c.l.b16 %v969
    %v1074 = vunpack.c.h.b16 %v969
    %v1075 = vunpack.c.l.b16 %v970
    %v1076 = vunpack.c.h.b16 %v970
    %v1077 = vunpack.c.l.b16 %v971
    %v1078 = vunpack.c.h.b16 %v971
    %v1079 = vunpack.c.l.b16 %v972
    %v1080 = vunpack.c.h.b16 %v972
    %v1081 = vunpack.c.l.b16 %v973
    %v1082 = vunpack.c.h.b16 %v973
    %v1083 = vunpack.c.l.b16 %v974
    %v1084 = vunpack.c.h.b16 %v974
    %v1085 = vunpack.c.l.b16 %v975
    %v1086 = vunpack.c.h.b16 %v975
    %v1087 = vunpack.c.l.b16 %v976
    %v1088 = vunpack.c.h.b16 %v976
    %v1089 = vunpack.c.l.b16 %v977
    %v1090 = vunpack.c.h.b16 %v977
    %v1091 = vunpack.c.l.b16 %v978
    %v1092 = vunpack.c.h.b16 %v978
    %v1093 = vunpack.c.l.b16 %v979
    %v1094 = vunpack.c.h.b16 %v979
    %v1095 = vunpack.c.l.b16 %v980
    %v1096 = vunpack.c.h.b16 %v980
    %v1097 = vunpack.c.l.b16 %v981
    %v1098 = vunpack.c.h.b16 %v981
    %v1099 = vunpack.c.l.b16 %v982
    %v1100 = vunpack.c.h.b16 %v982
    %v1101 = vunpack.c.l.b16 %v983
    %v1102 = vunpack.c.h.b16 %v983
    %v1103 = vunpack.c.l.b16 %v984
    %v1104 = vunpack.c.h.b16 %v984
    %v1105 = vpack.c.b16 %v1033, %v1025
    %v1106 = vpack.c.b16 %v1034, %v1026
    %v1107 = vpack.c.b16 %v1035, %v1027
    %v1108 = vpack.c.b16 %v1036, %v1028
    %v1109 = vpack.c.b16 %v1037, %v1029
    %v1110 = vpack.c.b16 %v1038, %v1030
    %v1111 = vpack.c.b16 %v1039, %v1031
    %v1112 = vpack.c.b16 %v1040, %v1032
    %v1113 = vpack.c.b16 %v1049, %v1041
    %v1114 = vpack.c.b16 %v1050, %v1042
    %v1115 = vpack.c.b16 %v1051, %v1043
    %v1116 = vpack.c.b16 %v1052, %v1044
    %v1117 = vpack.c.b16 %v1053, %v1045
    %v1118 = vpack.c.b16 %v1054, %v1046
    %v1119 = vpack.c.b16 %v1055, %v1047
    %v1120 = vpack.c.b16 %v1056, %v1048
    %v1121 = vpack.c.b16 %v1065, %v1057
    %v1122 = vpack.c.b16 %v1066, %v1058
    %v1123 = vpack.c.b16 %v1067, %v1059
    %v1124 = vpack.c.b16 %v1068, %v1060
    %v1125 = vpack.c.b16 %v1069, %v1061
    %v1126 = vpack.c.b16 %v1070, %v1062
    %v1127 = vpack.c.b16 %v1071, %v1063
    %v1128 = vpack.c.b16 %v1072, %v1064
    %v1129 = vpack.c.b16 %v1081, %v1073
    %v1130 = vpack.c.b16 %v1082, %v1074
    %v1131 = vpack.c.b16 %v1083, %v1075
    %v1132 = vpack.c.b16 %v1084, %v1076
    %v1133 = vpack.c.b16 %v1085, %v1077
    %v1134 = vpack.c.b16 %v1086, %v1078
    %v1135 = vpack.c.b16 %v1087, %v1079
    %v1136 = vpack.c.b16 %v1088, %v1080
    %v1137 = vpack.c.b16 %v1097, %v1089
    %v1138 = vpack.c.b16 %v1098, %v1090
    %v1139 = vpack.c.b16 %v1099, %v1091
    %v1140 = vpack.c.b16 %v1100, %v1092
    %v1141 = vpack.c.b16 %v1101, %v1093
    %v1142 = vpack.c.b16 %v1102, %v1094
    %v1143 = vpack.c.b16 %v1103, %v1095
    %v1144 = vpack.c.b16 %v1104, %v1096
    %vm1185 = vcmask 654336
    %v1187 = vsel %vm1185, %v944, 0
    %1189 = vmatprep.subr.bf16.mxu0 0
    %1190 = vmatpush1.bf16.msra.mxu0 0
    %1191 = vmatprep.subr.bf16.mxu0 0
    %1192 = vmatpush1.bf16.msra.mxu0 0
    %1193 = vmatprep.subr.bf16.mxu0 0
    %1194 = vmatpush1.bf16.msra.mxu0 0
    %1195 = vmatprep.subr.bf16.mxu0 %v1138
    %1196 = vmatpush1.bf16.msra.mxu0 %v1137
    %1197 = vmatprep.subr.bf16.mxu0 %v1130
    %1198 = vmatpush1.bf16.msra.mxu0 %v1129
    %1199 = vmatprep.subr.bf16.mxu0 %v1122
    %1200 = vmatpush1.bf16.msra.mxu0 %v1121
    %1201 = vmatprep.subr.bf16.mxu0 %v1114
    %1202 = vmatpush1.bf16.msra.mxu0 %v1113
    %1203 = vmatprep.subr.bf16.mxu0 %v1106
    %1204 = vmatpush1.bf16.msra.mxu0 %v1105
    %1205 = vmatprep.subr.bf16.mxu0 0
    %1206 = vmatpush2.bf16.msra.mxu0 0
    %1207 = vmatprep.subr.bf16.mxu0 0
    %1208 = vmatpush2.bf16.msra.mxu0 0
    %1209 = vmatprep.subr.bf16.mxu0 0
    %1210 = vmatpush2.bf16.msra.mxu0 0
    %1211 = vmatprep.subr.bf16.mxu0 0
    %1212 = vmatpush2.bf16.msra.mxu0 0
    %1213 = vmatprep.subr.bf16.mxu0 0
    %1214 = vmatpush2.bf16.msra.mxu0 0
    %1215 = vmatprep.subr.bf16.mxu0 0
    %1216 = vmatpush2.bf16.msra.mxu0 0
    %1217 = vmatprep.subr.bf16.mxu0 0
    %1218 = vmatpush2.bf16.msra.mxu0 0
    %1219 = vmatprep.subr.bf16.mxu0 0
    %1220 = vmatpush2.bf16.msra.mxu0 0
    %1221 = vmatprep.mubr.bf16.mxu0 0
    %1222 = vmatmul.mubr.bf16.gmra.mxu0 %v1187
    %v1223 = vpop.f32.mrf.mxu0
    %v1224 = vadd.f32 0.0, %v1223
    %v1225 = vpop.f32.mrf.mxu0
    %v1226 = vadd.f32 0.0, %v1225
    %v1227 = vpop.f32.mrf.mxu0
    %v1228 = vpop.f32.mrf.mxu0
    %1229 = vdwg.mxu0
    %1230 = vmatprep.subr.bf16.mxu0 0
    %1231 = vmatpush1.bf16.msra.mxu0 0
    %1232 = vmatprep.subr.bf16.mxu0 0
    %1233 = vmatpush1.bf16.msra.mxu0 0
    %1234 = vmatprep.subr.bf16.mxu0 0
    %1235 = vmatpush1.bf16.msra.mxu0 0
    %1236 = vmatprep.subr.bf16.mxu0 %v1140
    %1237 = vmatpush1.bf16.msra.mxu0 %v1139
    %1238 = vmatprep.subr.bf16.mxu0 %v1132
    %1239 = vmatpush1.bf16.msra.mxu0 %v1131
    %1240 = vmatprep.subr.bf16.mxu0 %v1124
    %1241 = vmatpush1.bf16.msra.mxu0 %v1123
    %1242 = vmatprep.subr.bf16.mxu0 %v1116
    %1243 = vmatpush1.bf16.msra.mxu0 %v1115
    %1244 = vmatprep.subr.bf16.mxu0 %v1108
    %1245 = vmatpush1.bf16.msra.mxu0 %v1107
    %1246 = vmatprep.subr.bf16.mxu0 0
    %1247 = vmatpush2.bf16.msra.mxu0 0
    %1248 = vmatprep.subr.bf16.mxu0 0
    %1249 = vmatpush2.bf16.msra.mxu0 0
    %1250 = vmatprep.subr.bf16.mxu0 0
    %1251 = vmatpush2.bf16.msra.mxu0 0
    %1252 = vmatprep.subr.bf16.mxu0 0
    %1253 = vmatpush2.bf16.msra.mxu0 0
    %1254 = vmatprep.subr.bf16.mxu0 0
    %1255 = vmatpush2.bf16.msra.mxu0 0
    %1256 = vmatprep.subr.bf16.mxu0 0
    %1257 = vmatpush2.bf16.msra.mxu0 0
    %1258 = vmatprep.subr.bf16.mxu0 0
    %1259 = vmatpush2.bf16.msra.mxu0 0
    %1260 = vmatprep.subr.bf16.mxu0 0
    %1261 = vmatpush2.bf16.msra.mxu0 0
    %1262 = vmatprep.mubr.bf16.mxu0 0
    %1263 = vmatmul.mubr.bf16.gmra.mxu0 %v1187
    %v1264 = vpop.f32.mrf.mxu0
    %v1265 = vadd.f32 0.0, %v1264
    %v1266 = vpop.f32.mrf.mxu0
    %v1267 = vadd.f32 0.0, %v1266
    %v1268 = vpop.f32.mrf.mxu0
    %v1269 = vpop.f32.mrf.mxu0
    %1270 = vdwg.mxu0
    %1271 = vmatprep.subr.bf16.mxu0 0
    %1272 = vmatpush1.bf16.msra.mxu0 0
    %1273 = vmatprep.subr.bf16.mxu0 0
    %1274 = vmatpush1.bf16.msra.mxu0 0
    %1275 = vmatprep.subr.bf16.mxu0 0
    %1276 = vmatpush1.bf16.msra.mxu0 0
    %1277 = vmatprep.subr.bf16.mxu0 %v1142
    %1278 = vmatpush1.bf16.msra.mxu0 %v1141
    %1279 = vmatprep.subr.bf16.mxu0 %v1134
    %1280 = vmatpush1.bf16.msra.mxu0 %v1133
    %1281 = vmatprep.subr.bf16.mxu0 %v1126
    %1282 = vmatpush1.bf16.msra.mxu0 %v1125
    %1283 = vmatprep.subr.bf16.mxu0 %v1118
    %1284 = vmatpush1.bf16.msra.mxu0 %v1117
    %1285 = vmatprep.subr.bf16.mxu0 %v1110
    %1286 = vmatpush1.bf16.msra.mxu0 %v1109
    %1287 = vmatprep.subr.bf16.mxu0 0
    %1288 = vmatpush2.bf16.msra.mxu0 0
    %1289 = vmatprep.subr.bf16.mxu0 0
    %1290 = vmatpush2.bf16.msra.mxu0 0
    %1291 = vmatprep.subr.bf16.mxu0 0
    %1292 = vmatpush2.bf16.msra.mxu0 0
    %1293 = vmatprep.subr.bf16.mxu0 0
    %1294 = vmatpush2.bf16.msra.mxu0 0
    %1295 = vmatprep.subr.bf16.mxu0 0
    %1296 = vmatpush2.bf16.msra.mxu0 0
    %1297 = vmatprep.subr.bf16.mxu0 0
    %1298 = vmatpush2.bf16.msra.mxu0 0
    %1299 = vmatprep.subr.bf16.mxu0 0
    %1300 = vmatpush2.bf16.msra.mxu0 0
    %1301 = vmatprep.subr.bf16.mxu0 0
    %1302 = vmatpush2.bf16.msra.mxu0 0
    %1303 = vmatprep.mubr.bf16.mxu0 0
    %1304 = vmatmul.mubr.bf16.gmra.mxu0 %v1187
    %v1305 = vpop.f32.mrf.mxu0
    %v1306 = vadd.f32 0.0, %v1305
    %v1307 = vpop.f32.mrf.mxu0
    %v1308 = vadd.f32 0.0, %v1307
    %v1309 = vpop.f32.mrf.mxu0
    %v1310 = vpop.f32.mrf.mxu0
    %1311 = vdwg.mxu0
    %1312 = vmatprep.subr.bf16.mxu0 0
    %1313 = vmatpush1.bf16.msra.mxu0 0
    %1314 = vmatprep.subr.bf16.mxu0 0
    %1315 = vmatpush1.bf16.msra.mxu0 0
    %1316 = vmatprep.subr.bf16.mxu0 0
    %1317 = vmatpush1.bf16.msra.mxu0 0
    %1318 = vmatprep.subr.bf16.mxu0 %v1144
    %1319 = vmatpush1.bf16.msra.mxu0 %v1143
    %1320 = vmatprep.subr.bf16.mxu0 %v1136
    %1321 = vmatpush1.bf16.msra.mxu0 %v1135
    %1322 = vmatprep.subr.bf16.mxu0 %v1128
    %1323 = vmatpush1.bf16.msra.mxu0 %v1127
    %1324 = vmatprep.subr.bf16.mxu0 %v1120
    %1325 = vmatpush1.bf16.msra.mxu0 %v1119
    %1326 = vmatprep.subr.bf16.mxu0 %v1112
    %1327 = vmatpush1.bf16.msra.mxu0 %v1111
    %1328 = vmatprep.subr.bf16.mxu0 0
    %1329 = vmatpush2.bf16.msra.mxu0 0
    %1330 = vmatprep.subr.bf16.mxu0 0
    %1331 = vmatpush2.bf16.msra.mxu0 0
    %1332 = vmatprep.subr.bf16.mxu0 0
    %1333 = vmatpush2.bf16.msra.mxu0 0
    %1334 = vmatprep.subr.bf16.mxu0 0
    %1335 = vmatpush2.bf16.msra.mxu0 0
    %1336 = vmatprep.subr.bf16.mxu0 0
    %1337 = vmatpush2.bf16.msra.mxu0 0
    %1338 = vmatprep.subr.bf16.mxu0 0
    %1339 = vmatpush2.bf16.msra.mxu0 0
    %1340 = vmatprep.subr.bf16.mxu0 0
    %1341 = vmatpush2.bf16.msra.mxu0 0
    %1342 = vmatprep.subr.bf16.mxu0 0
    %1343 = vmatpush2.bf16.msra.mxu0 0
    %1344 = vmatprep.mubr.bf16.mxu0 0
    %1345 = vmatmul.mubr.bf16.gmra.mxu0 %v1187
    %v1346 = vpop.f32.mrf.mxu0
    %v1347 = vadd.f32 0.0, %v1346
    %v1348 = vpop.f32.mrf.mxu0
    %v1349 = vadd.f32 0.0, %v1348
    %v1350 = vpop.f32.mrf.mxu0
    %v1351 = vpop.f32.mrf.mxu0
    %1352 = vdwg.mxu0
    %v1353 = vmul.f32 %v1224, 0.5
    %v1354 = vmul.f32 %v1226, 0.5
    %v1355 = vmul.f32 %v1265, 0.5
    %v1356 = vmul.f32 %v1267, 0.5
    %v1357 = vmul.f32 %v1306, 0.5
    %v1358 = vmul.f32 %v1308, 0.5
    %v1359 = vmul.f32 %v1347, 0.5
    %v1360 = vmul.f32 %v1349, 0.5
    %v1361 = vadd.f32 %v1353, 0.5
    %v1362 = vadd.f32 %v1354, 0.5
    %v1363 = vadd.f32 %v1355, 0.5
    %v1364 = vadd.f32 %v1356, 0.5
    %v1365 = vadd.f32 %v1357, 0.5
    %v1366 = vadd.f32 %v1358, 0.5
    %v1367 = vadd.f32 %v1359, 0.5
    %v1368 = vadd.f32 %v1360, 0.5
    %v1377 = vcombine.low %v1361, %v1362
    %v1378 = vcombine.low %v1363, %v1364
    %v1380 = vunpack.c.l.s4 1983009808
    %v1381 = vunpack.c.0.s8 %v1380
    %v1382 = vlaneseq
    %v1383 = vshrl.u32 %v1382, 7
    %v1384 = vsub.s32 %v1381, %v1383
    %v1385 = vrot.slane %v1377, %v1384
    %v1387 = vunpack.c.l.s4 1983009808
    %v1388 = vunpack.c.0.s8 %v1387
    %v1389 = vlaneseq
    %v1390 = vshrl.u32 %v1389, 7
    %v1391 = vsub.s32 %v1388, %v1390
    %v1392 = vrot.slane %v1378, %v1391
    %v1393 = vcombine.low %v1385, %v1392
    %v1394 = vcombine.low %v1365, %v1366
    %v1395 = vcombine.low %v1367, %v1368
    %v1397 = vunpack.c.l.s4 1983009808
    %v1398 = vunpack.c.0.s8 %v1397
    %v1399 = vlaneseq
    %v1400 = vshrl.u32 %v1399, 7
    %v1401 = vsub.s32 %v1398, %v1400
    %v1402 = vrot.slane %v1394, %v1401
    %v1404 = vunpack.c.l.s4 1983009808
    %v1405 = vunpack.c.0.s8 %v1404
    %v1406 = vlaneseq
    %v1407 = vshrl.u32 %v1406, 7
    %v1408 = vsub.s32 %v1405, %v1407
    %v1409 = vrot.slane %v1395, %v1408
    %v1410 = vcombine.low %v1402, %v1409
    %1413 = vst [vmem:[#allocation5] sm:$0xff] %v1393
    %1414 = vst [vmem:[#allocation5 + $0x8] sm:$0xff] %v1410
    // Predicated region
    $region38: #{tpu_custom_call.1} parent=1 // pred_check
      _
    $region39: #{tpu_custom_call.1} parent=1 // pred_check_branch
      %1416 = sbr.rel (0) target = $region41
    $region40: #{tpu_custom_call.1} parent=1 // pred_region
      %s1418 = ssub.s32 256, 256
      %1419 = vsyncadd [#allocation3], %s1418
      %s1421 = sshll.u32 [#allocation5], 4
      %s1422 = int_to_ptr.vmem [resolvable:$true] %s1421
      %1424 = dma.vmem_to_hbm [thread:$0]  %s1422, 256, %s8, [#allocation3]
    $region41: #{tpu_custom_call.1} parent=1 // pred_fallthru
      _
    // Predicated region
    $region42: #{tpu_custom_call.1} parent=1 // pred_check
      _
    $region43: #{tpu_custom_call.1} parent=1 // pred_check_branch
      %1426 = sbr.rel (0) target = $region45
    $region44: #{tpu_custom_call.1} parent=1 // pred_region
      %1427 = dma.done [#allocation3], 256
    $region45: #{tpu_custom_call.1} parent=1 // pred_fallthru
      _
    %1428 = vsyncpa [#allocation3], 1
    %1429 = vsyncpa [#allocation4], 1

</llo_original>
